<compile_context>
chip_gen: v7x
topology: tpu7x:2x2x1
jax: 0.10.0
libtpu: 0.0.40
codegen_flags: <defaults>
</compile_context>

<pallas_src>
import functools

import jax
import jax.numpy as jnp
from jax.experimental import pallas as pl
from jax.experimental.pallas import tpu as pltpu


def _resblock_kernel(x_ref, w1_ref, b1_ref, w2_ref, b2_ref, mask_ref, o_ref,
                     xpad_ref, stack_ref, *, W, K):
    # x_ref    : (C, Lb)          activations, Lb = NB*H*W on the lane axis
    # w*_ref   : (C, K*K*C) bf16  fused im2col weights
    # b*_ref   : (C, 1)    f32    biases
    # mask_ref : (K*K, 1, Lb) f32 per-tap validity masks (row & col in range)
    # o_ref    : (C, Lb)          output (lane-dense, full-width stores)
    # xpad_ref : (C, Lb + 2*pad)  f32 flat-padded activation scratch
    # stack_ref: (K*K*C, Lb) bf16 im2col stack
    C, Lb = x_ref.shape
    p = (K - 1) // 2
    pad = p * (W + 1)
    Ltot = xpad_ref.shape[1]

    # Zero only the end halos; the interior is fully overwritten each conv and
    # interior batch boundaries are handled by the per-tap masks.  This runs
    # every grid step on purpose (correct under v7x 2-TC parallel sharding).
    halo = jnp.zeros((C, pad), jnp.float32)
    xpad_ref[:, 0:pad] = halo
    xpad_ref[:, pad + Lb:Ltot] = halo

    # Hoist the (1, Lb) masks out of the tap loops.
    masks = [mask_ref[t] for t in range(K * K)]

    def conv(v, w_ref, b_ref):
        # v: (C, Lb) f32 activation in dense (channels, batch*spatial) layout.
        xpad_ref[:, pad:pad + Lb] = v
        # Build the bf16 im2col stack: K*K lane-shifted, validity-masked taps.
        for kh in range(K):
            for kw in range(K):
                t = kh * K + kw
                off = (kh - p) * W + (kw - p)
                xs = xpad_ref[:, pad + off:pad + off + Lb]      # (C, Lb) f32
                if not (kh == p and kw == p):                   # center tap: all-ones mask
                    xs = xs * masks[t]                          # f32 VPU multiply
                stack_ref[t * C:(t + 1) * C, :] = xs.astype(jnp.bfloat16)
        # ONE fused MXU matmul per conv over the whole batch block:
        # (C, K*K*C) @ (K*K*C, NB*H*W), f32 accumulation.
        y = jnp.dot(w_ref[...], stack_ref[...],
                    preferred_element_type=jnp.float32)
        return y + b_ref[...]

    x = x_ref[...].astype(jnp.float32)                          # residual
    y1 = jnp.maximum(conv(x, w1_ref, b1_ref), 0.0)
    y2 = conv(y1, w2_ref, b2_ref)
    o_ref[...] = jnp.maximum(y2 + x, 0.0).astype(o_ref.dtype)


@functools.partial(jax.jit, static_argnames=("batch_block",))
def resblock_pallas(x_nchw, w1_oihw, b1, w2_oihw, b2, *, batch_block=None):
    """x_nchw: (N, C, H, W) float. PyTorch Conv2d weights (OIHW) / biases (C,)."""
    N, C, H, W = x_nchw.shape
    K = w1_oihw.shape[-1]
    p = (K - 1) // 2
    S = H * W

    if batch_block is None:
        # Aim for a few hundred KiB of activations per grid step, but keep at
        # least 2 grid steps so the "parallel" axis can use both v7x cores.
        bytes_per_batch = C * S * x_nchw.dtype.itemsize
        nb = max(1, (256 * 1024) // max(bytes_per_batch, 1))
        nb = min(nb, max(1, N // 2))
        while N % nb:
            nb -= 1
        batch_block = nb
    NB = batch_block
    assert N % NB == 0, "batch_block must divide N"
    Lb = NB * S
    pad = p * (W + 1)

    # Dense (C, N*S) layout: channels on sublanes, batch*spatial on lanes.
    x_dense = jnp.transpose(x_nchw.reshape(N, C, S), (1, 0, 2)).reshape(C, N * S)

    # Fused im2col weights: column index = (kh*K + kw)*C + ci.
    wf1 = jnp.transpose(w1_oihw, (0, 2, 3, 1)).reshape(C, K * K * C).astype(jnp.bfloat16)
    wf2 = jnp.transpose(w2_oihw, (0, 2, 3, 1)).reshape(C, K * K * C).astype(jnp.bfloat16)
    b1r = b1.reshape(C, 1).astype(jnp.float32)
    b2r = b2.reshape(C, 1).astype(jnp.float32)

    # Per-tap validity masks (row AND column in range), tiled across the NB
    # batch elements that share one grid step (mask is periodic with period S).
    lane = jnp.arange(S, dtype=jnp.int32)
    row = lane // W
    col = lane % W
    m_rows = []
    for kh in range(K):
        for kw in range(K):
            rr = row + (kh - p)
            cc = col + (kw - p)
            m_rows.append(((rr >= 0) & (rr < H) & (cc >= 0) & (cc < W)).astype(jnp.float32))
    masks = jnp.tile(jnp.stack(m_rows, axis=0).reshape(K * K, 1, S), (1, 1, NB))

    kernel = functools.partial(_resblock_kernel, W=W, K=K)

    out_dense = pl.pallas_call(
        kernel,
        out_shape=jax.ShapeDtypeStruct((C, N * S), x_nchw.dtype),
        grid_spec=pltpu.PrefetchScalarGridSpec(
            num_scalar_prefetch=0,
            grid=(N // NB,),
            in_specs=[
                pl.BlockSpec((C, Lb), lambda n: (0, n)),
                pl.BlockSpec((C, K * K * C), lambda n: (0, 0)),
                pl.BlockSpec((C, 1), lambda n: (0, 0)),
                pl.BlockSpec((C, K * K * C), lambda n: (0, 0)),
                pl.BlockSpec((C, 1), lambda n: (0, 0)),
                pl.BlockSpec((K * K, 1, Lb), lambda n: (0, 0, 0)),
            ],
            out_specs=pl.BlockSpec((C, Lb), lambda n: (0, n)),
            scratch_shapes=[
                pltpu.VMEM((C, Lb + 2 * pad), jnp.float32),   # flat-padded activations
                pltpu.VMEM((K * K * C, Lb), jnp.bfloat16),    # bf16 im2col stack
            ],
        ),
        compiler_params=pltpu.CompilerParams(
            dimension_semantics=("parallel",)),
    )(x_dense, wf1, b1r, wf2, b2r, masks)

    # Back to NCHW (cheap transpose on small data).
    return jnp.transpose(out_dense.reshape(C, N, S), (1, 0, 2)).reshape(N, C, H, W)


def _reference(x_nchw, w1, b1, w2, b2):
    """Pure-JAX reference matching PyTorch Conv2d semantics (NCHW, OIHW)."""
    K = w1.shape[-1]
    p = (K - 1) // 2
    dn = jax.lax.conv_dimension_numbers(x_nchw.shape, w1.shape,
                                        ("NCHW", "OIHW", "NCHW"))

    def conv(x, w, b):
        y = jax.lax.conv_general_dilated(x, w, (1, 1), ((p, p), (p, p)),
                                         dimension_numbers=dn)
        return y + b.reshape(1, -1, 1, 1)

    y = jax.nn.relu(conv(x_nchw, w1, b1))
    y = conv(y, w2, b2)
    return jax.nn.relu(y + x_nchw)


if __name__ == "__main__":
    N, C, H, W, K = 2, 4, 16, 16, 3

    key = jax.random.PRNGKey(0)
    kx, k1, k2, k3, k4 = jax.random.split(key, 5)

    x = jax.random.normal(kx, (N, C, H, W), dtype=jnp.float32)
    # PyTorch Conv2d shapes: OIHW weights, (C,) bias.
    w1 = 0.1 * jax.random.normal(k1, (C, C, K, K), dtype=jnp.float32)
    b1 = 0.1 * jax.random.normal(k2, (C,), dtype=jnp.float32)
    w2 = 0.1 * jax.random.normal(k3, (C, C, K, K), dtype=jnp.float32)
    b2 = 0.1 * jax.random.normal(k4, (C,), dtype=jnp.float32)

    out = jax.block_until_ready(resblock_pallas(x, w1, b1, w2, b2))

    ref = _reference(x, w1, b1, w2, b2)
    assert out.shape == (N, C, H, W)
    # Tolerance loosened for bf16 matmul operands (f32 accumulation).
    assert jnp.allclose(out, ref, atol=5e-2, rtol=5e-2), "mismatch vs reference"

    print("KERNEL_OK")
</pallas_src>

<mosaic_0001>
module attributes {stable_mosaic.version = 11 : i64} {
  func.func @_resblock_kernel(%arg0: i32, %arg1: memref<4x256xf32, #tpu.memory_space<vmem>>, %arg2: memref<4x36xbf16, #tpu.memory_space<vmem>>, %arg3: memref<4x1xf32, #tpu.memory_space<vmem>>, %arg4: memref<4x36xbf16, #tpu.memory_space<vmem>>, %arg5: memref<4x1xf32, #tpu.memory_space<vmem>>, %arg6: memref<9x1x256xf32, #tpu.memory_space<vmem>>, %arg7: memref<4x256xf32, #tpu.memory_space<vmem>>, %arg8: memref<4x290xf32, #tpu.memory_space<vmem>>, %arg9: memref<36x256xbf16, #tpu.memory_space<vmem>>) attributes {dimension_semantics = [#tpu.dimension_semantics<parallel>], iteration_bounds = array<i64: 2>, scalar_prefetch = 0 : i64, scratch_operands = 2 : i64, tpu.core_type = #tpu.core_type<tc>, window_params = [{transform_indices = @transform_0, window_bounds = array<i64: 4, 256>}, {pipeline_mode = #tpu.pipeline_mode<synchronous>, transform_indices = @transform_1, window_bounds = array<i64: 4, 36>}, {pipeline_mode = #tpu.pipeline_mode<synchronous>, transform_indices = @transform_2, window_bounds = array<i64: 4, 1>}, {pipeline_mode = #tpu.pipeline_mode<synchronous>, transform_indices = @transform_3, window_bounds = array<i64: 4, 36>}, {pipeline_mode = #tpu.pipeline_mode<synchronous>, transform_indices = @transform_4, window_bounds = array<i64: 4, 1>}, {pipeline_mode = #tpu.pipeline_mode<synchronous>, transform_indices = @transform_5, window_bounds = array<i64: 9, 1, 256>}, {transform_indices = @transform_6, window_bounds = array<i64: 4, 256>}]} {
    %cst = arith.constant 0.000000e+00 : f32
    %0 = vector.broadcast %cst : f32 to vector<4x17xf32>
    %c0 = arith.constant 0 : index
    %c0_0 = arith.constant 0 : index
    %1 = vector.load %arg8[%c0, %c0_0] : memref<4x290xf32, #tpu.memory_space<vmem>>, vector<4x17xf32>
    tpu.vector_store %arg8[%c0, %c0_0], %0 {strides = array<i32>} : memref<4x290xf32, #tpu.memory_space<vmem>>, vector<4x17xf32>,
    %c0_1 = arith.constant 0 : index
    %c273 = arith.constant 273 : index
    %2 = vector.load %arg8[%c0_1, %c273] : memref<4x290xf32, #tpu.memory_space<vmem>>, vector<4x17xf32>
    tpu.vector_store %arg8[%c0_1, %c273], %0 {strides = array<i32>} : memref<4x290xf32, #tpu.memory_space<vmem>>, vector<4x17xf32>,
    %c0_2 = arith.constant 0 : index
    %c0_3 = arith.constant 0 : index
    %c0_4 = arith.constant 0 : index
    %3 = vector.load %arg6[%c0_2, %c0_3, %c0_4] : memref<9x1x256xf32, #tpu.memory_space<vmem>>, vector<1x1x256xf32>
    %4 = vector.shape_cast %3 : vector<1x1x256xf32> to vector<1x256xf32>
    %c1 = arith.constant 1 : index
    %c0_5 = arith.constant 0 : index
    %c0_6 = arith.constant 0 : index
    %5 = vector.load %arg6[%c1, %c0_5, %c0_6] : memref<9x1x256xf32, #tpu.memory_space<vmem>>, vector<1x1x256xf32>
    %6 = vector.shape_cast %5 : vector<1x1x256xf32> to vector<1x256xf32>
    %c2 = arith.constant 2 : index
    %c0_7 = arith.constant 0 : index
    %c0_8 = arith.constant 0 : index
    %7 = vector.load %arg6[%c2, %c0_7, %c0_8] : memref<9x1x256xf32, #tpu.memory_space<vmem>>, vector<1x1x256xf32>
    %8 = vector.shape_cast %7 : vector<1x1x256xf32> to vector<1x256xf32>
    %c3 = arith.constant 3 : index
    %c0_9 = arith.constant 0 : index
    %c0_10 = arith.constant 0 : index
    %9 = vector.load %arg6[%c3, %c0_9, %c0_10] : memref<9x1x256xf32, #tpu.memory_space<vmem>>, vector<1x1x256xf32>
    %10 = vector.shape_cast %9 : vector<1x1x256xf32> to vector<1x256xf32>
    %c5 = arith.constant 5 : index
    %c0_11 = arith.constant 0 : index
    %c0_12 = arith.constant 0 : index
    %11 = vector.load %arg6[%c5, %c0_11, %c0_12] : memref<9x1x256xf32, #tpu.memory_space<vmem>>, vector<1x1x256xf32>
    %12 = vector.shape_cast %11 : vector<1x1x256xf32> to vector<1x256xf32>
    %c6 = arith.constant 6 : index
    %c0_13 = arith.constant 0 : index
    %c0_14 = arith.constant 0 : index
    %13 = vector.load %arg6[%c6, %c0_13, %c0_14] : memref<9x1x256xf32, #tpu.memory_space<vmem>>, vector<1x1x256xf32>
    %14 = vector.shape_cast %13 : vector<1x1x256xf32> to vector<1x256xf32>
    %c7 = arith.constant 7 : index
    %c0_15 = arith.constant 0 : index
    %c0_16 = arith.constant 0 : index
    %15 = vector.load %arg6[%c7, %c0_15, %c0_16] : memref<9x1x256xf32, #tpu.memory_space<vmem>>, vector<1x1x256xf32>
    %16 = vector.shape_cast %15 : vector<1x1x256xf32> to vector<1x256xf32>
    %c8 = arith.constant 8 : index
    %c0_17 = arith.constant 0 : index
    %c0_18 = arith.constant 0 : index
    %17 = vector.load %arg6[%c8, %c0_17, %c0_18] : memref<9x1x256xf32, #tpu.memory_space<vmem>>, vector<1x1x256xf32>
    %18 = vector.shape_cast %17 : vector<1x1x256xf32> to vector<1x256xf32>
    %c0_19 = arith.constant 0 : index
    %c0_20 = arith.constant 0 : index
    %19 = vector.load %arg1[%c0_19, %c0_20] : memref<4x256xf32, #tpu.memory_space<vmem>>, vector<4x256xf32>
    %c0_21 = arith.constant 0 : index
    %c17 = arith.constant 17 : index
    %20 = vector.load %arg8[%c0_21, %c17] : memref<4x290xf32, #tpu.memory_space<vmem>>, vector<4x256xf32>
    tpu.vector_store %arg8[%c0_21, %c17], %19 {strides = array<i32>} : memref<4x290xf32, #tpu.memory_space<vmem>>, vector<4x256xf32>,
    %c0_22 = arith.constant 0 : index
    %c0_23 = arith.constant 0 : index
    %21 = vector.load %arg8[%c0_22, %c0_23] : memref<4x290xf32, #tpu.memory_space<vmem>>, vector<4x256xf32>
    %22 = vector.broadcast %4 : vector<1x256xf32> to vector<4x256xf32>
    %23 = arith.mulf %21, %22 : vector<4x256xf32>
    %24 = arith.truncf %23 : vector<4x256xf32> to vector<4x256xbf16>
    %c0_24 = arith.constant 0 : index
    %c0_25 = arith.constant 0 : index
    %25 = vector.load %arg9[%c0_24, %c0_25] : memref<36x256xbf16, #tpu.memory_space<vmem>>, vector<4x256xbf16>
    tpu.vector_store %arg9[%c0_24, %c0_25], %24 {strides = array<i32>} : memref<36x256xbf16, #tpu.memory_space<vmem>>, vector<4x256xbf16>,
    %c0_26 = arith.constant 0 : index
    %c1_27 = arith.constant 1 : index
    %26 = vector.load %arg8[%c0_26, %c1_27] : memref<4x290xf32, #tpu.memory_space<vmem>>, vector<4x256xf32>
    %27 = vector.broadcast %6 : vector<1x256xf32> to vector<4x256xf32>
    %28 = arith.mulf %26, %27 : vector<4x256xf32>
    %29 = arith.truncf %28 : vector<4x256xf32> to vector<4x256xbf16>
    %c4 = arith.constant 4 : index
    %c0_28 = arith.constant 0 : index
    %30 = vector.load %arg9[%c4, %c0_28] : memref<36x256xbf16, #tpu.memory_space<vmem>>, vector<4x256xbf16>
    tpu.vector_store %arg9[%c4, %c0_28], %29 {strides = array<i32>} : memref<36x256xbf16, #tpu.memory_space<vmem>>, vector<4x256xbf16>,
    %c0_29 = arith.constant 0 : index
    %c2_30 = arith.constant 2 : index
    %31 = vector.load %arg8[%c0_29, %c2_30] : memref<4x290xf32, #tpu.memory_space<vmem>>, vector<4x256xf32>
    %32 = vector.broadcast %8 : vector<1x256xf32> to vector<4x256xf32>
    %33 = arith.mulf %31, %32 : vector<4x256xf32>
    %34 = arith.truncf %33 : vector<4x256xf32> to vector<4x256xbf16>
    %c8_31 = arith.constant 8 : index
    %c0_32 = arith.constant 0 : index
    %35 = vector.load %arg9[%c8_31, %c0_32] : memref<36x256xbf16, #tpu.memory_space<vmem>>, vector<4x256xbf16>
    tpu.vector_store %arg9[%c8_31, %c0_32], %34 {strides = array<i32>} : memref<36x256xbf16, #tpu.memory_space<vmem>>, vector<4x256xbf16>,
    %c0_33 = arith.constant 0 : index
    %c16 = arith.constant 16 : index
    %36 = vector.load %arg8[%c0_33, %c16] : memref<4x290xf32, #tpu.memory_space<vmem>>, vector<4x256xf32>
    %37 = vector.broadcast %10 : vector<1x256xf32> to vector<4x256xf32>
    %38 = arith.mulf %36, %37 : vector<4x256xf32>
    %39 = arith.truncf %38 : vector<4x256xf32> to vector<4x256xbf16>
    %c12 = arith.constant 12 : index
    %c0_34 = arith.constant 0 : index
    %40 = vector.load %arg9[%c12, %c0_34] : memref<36x256xbf16, #tpu.memory_space<vmem>>, vector<4x256xbf16>
    tpu.vector_store %arg9[%c12, %c0_34], %39 {strides = array<i32>} : memref<36x256xbf16, #tpu.memory_space<vmem>>, vector<4x256xbf16>,
    %c0_35 = arith.constant 0 : index
    %c17_36 = arith.constant 17 : index
    %41 = vector.load %arg8[%c0_35, %c17_36] : memref<4x290xf32, #tpu.memory_space<vmem>>, vector<4x256xf32>
    %42 = arith.truncf %41 : vector<4x256xf32> to vector<4x256xbf16>
    %c16_37 = arith.constant 16 : index
    %c0_38 = arith.constant 0 : index
    %43 = vector.load %arg9[%c16_37, %c0_38] : memref<36x256xbf16, #tpu.memory_space<vmem>>, vector<4x256xbf16>
    tpu.vector_store %arg9[%c16_37, %c0_38], %42 {strides = array<i32>} : memref<36x256xbf16, #tpu.memory_space<vmem>>, vector<4x256xbf16>,
    %c0_39 = arith.constant 0 : index
    %c18 = arith.constant 18 : index
    %44 = vector.load %arg8[%c0_39, %c18] : memref<4x290xf32, #tpu.memory_space<vmem>>, vector<4x256xf32>
    %45 = vector.broadcast %12 : vector<1x256xf32> to vector<4x256xf32>
    %46 = arith.mulf %44, %45 : vector<4x256xf32>
    %47 = arith.truncf %46 : vector<4x256xf32> to vector<4x256xbf16>
    %c20 = arith.constant 20 : index
    %c0_40 = arith.constant 0 : index
    %48 = vector.load %arg9[%c20, %c0_40] : memref<36x256xbf16, #tpu.memory_space<vmem>>, vector<4x256xbf16>
    tpu.vector_store %arg9[%c20, %c0_40], %47 {strides = array<i32>} : memref<36x256xbf16, #tpu.memory_space<vmem>>, vector<4x256xbf16>,
    %c0_41 = arith.constant 0 : index
    %c32 = arith.constant 32 : index
    %49 = vector.load %arg8[%c0_41, %c32] : memref<4x290xf32, #tpu.memory_space<vmem>>, vector<4x256xf32>
    %50 = vector.broadcast %14 : vector<1x256xf32> to vector<4x256xf32>
    %51 = arith.mulf %49, %50 : vector<4x256xf32>
    %52 = arith.truncf %51 : vector<4x256xf32> to vector<4x256xbf16>
    %c24 = arith.constant 24 : index
    %c0_42 = arith.constant 0 : index
    %53 = vector.load %arg9[%c24, %c0_42] : memref<36x256xbf16, #tpu.memory_space<vmem>>, vector<4x256xbf16>
    tpu.vector_store %arg9[%c24, %c0_42], %52 {strides = array<i32>} : memref<36x256xbf16, #tpu.memory_space<vmem>>, vector<4x256xbf16>,
    %c0_43 = arith.constant 0 : index
    %c33 = arith.constant 33 : index
    %54 = vector.load %arg8[%c0_43, %c33] : memref<4x290xf32, #tpu.memory_space<vmem>>, vector<4x256xf32>
    %55 = vector.broadcast %16 : vector<1x256xf32> to vector<4x256xf32>
    %56 = arith.mulf %54, %55 : vector<4x256xf32>
    %57 = arith.truncf %56 : vector<4x256xf32> to vector<4x256xbf16>
    %c28 = arith.constant 28 : index
    %c0_44 = arith.constant 0 : index
    %58 = vector.load %arg9[%c28, %c0_44] : memref<36x256xbf16, #tpu.memory_space<vmem>>, vector<4x256xbf16>
    tpu.vector_store %arg9[%c28, %c0_44], %57 {strides = array<i32>} : memref<36x256xbf16, #tpu.memory_space<vmem>>, vector<4x256xbf16>,
    %c0_45 = arith.constant 0 : index
    %c34 = arith.constant 34 : index
    %59 = vector.load %arg8[%c0_45, %c34] : memref<4x290xf32, #tpu.memory_space<vmem>>, vector<4x256xf32>
    %60 = vector.broadcast %18 : vector<1x256xf32> to vector<4x256xf32>
    %61 = arith.mulf %59, %60 : vector<4x256xf32>
    %62 = arith.truncf %61 : vector<4x256xf32> to vector<4x256xbf16>
    %c32_46 = arith.constant 32 : index
    %c0_47 = arith.constant 0 : index
    %63 = vector.load %arg9[%c32_46, %c0_47] : memref<36x256xbf16, #tpu.memory_space<vmem>>, vector<4x256xbf16>
    tpu.vector_store %arg9[%c32_46, %c0_47], %62 {strides = array<i32>} : memref<36x256xbf16, #tpu.memory_space<vmem>>, vector<4x256xbf16>,
    %c0_48 = arith.constant 0 : index
    %c0_49 = arith.constant 0 : index
    %64 = vector.load %arg2[%c0_48, %c0_49] : memref<4x36xbf16, #tpu.memory_space<vmem>>, vector<4x36xbf16>
    %c0_50 = arith.constant 0 : index
    %c0_51 = arith.constant 0 : index
    %65 = vector.load %arg9[%c0_50, %c0_51] : memref<36x256xbf16, #tpu.memory_space<vmem>>, vector<36x256xbf16>
    %cst_52 = arith.constant dense<0.000000e+00> : vector<4x256xf32>
    %66 = tpu.matmul %64, %65, %cst_52 {dimension_numbers = #tpu.dot_dimension_numbers<[1], [0], [0], [1], [0, 0, 1, 1], [], []>} : vector<4x36xbf16>, vector<36x256xbf16>, vector<4x256xf32> -> vector<4x256xf32>
    %c0_53 = arith.constant 0 : index
    %c0_54 = arith.constant 0 : index
    %67 = vector.load %arg3[%c0_53, %c0_54] : memref<4x1xf32, #tpu.memory_space<vmem>>, vector<4x1xf32>
    %68 = vector.broadcast %67 : vector<4x1xf32> to vector<4x256xf32>
    %69 = arith.addf %66, %68 : vector<4x256xf32>
    %cst_55 = arith.constant 0.000000e+00 : f32
    %70 = vector.broadcast %cst_55 : f32 to vector<4x256xf32>
    %71 = arith.maximumf %69, %70 : vector<4x256xf32>
    %c0_56 = arith.constant 0 : index
    %c17_57 = arith.constant 17 : index
    %72 = vector.load %arg8[%c0_56, %c17_57] : memref<4x290xf32, #tpu.memory_space<vmem>>, vector<4x256xf32>
    tpu.vector_store %arg8[%c0_56, %c17_57], %71 {strides = array<i32>} : memref<4x290xf32, #tpu.memory_space<vmem>>, vector<4x256xf32>,
    %c0_58 = arith.constant 0 : index
    %c0_59 = arith.constant 0 : index
    %73 = vector.load %arg8[%c0_58, %c0_59] : memref<4x290xf32, #tpu.memory_space<vmem>>, vector<4x256xf32>
    %74 = vector.broadcast %4 : vector<1x256xf32> to vector<4x256xf32>
    %75 = arith.mulf %73, %74 : vector<4x256xf32>
    %76 = arith.truncf %75 : vector<4x256xf32> to vector<4x256xbf16>
    %c0_60 = arith.constant 0 : index
    %c0_61 = arith.constant 0 : index
    %77 = vector.load %arg9[%c0_60, %c0_61] : memref<36x256xbf16, #tpu.memory_space<vmem>>, vector<4x256xbf16>
    tpu.vector_store %arg9[%c0_60, %c0_61], %76 {strides = array<i32>} : memref<36x256xbf16, #tpu.memory_space<vmem>>, vector<4x256xbf16>,
    %c0_62 = arith.constant 0 : index
    %c1_63 = arith.constant 1 : index
    %78 = vector.load %arg8[%c0_62, %c1_63] : memref<4x290xf32, #tpu.memory_space<vmem>>, vector<4x256xf32>
    %79 = vector.broadcast %6 : vector<1x256xf32> to vector<4x256xf32>
    %80 = arith.mulf %78, %79 : vector<4x256xf32>
    %81 = arith.truncf %80 : vector<4x256xf32> to vector<4x256xbf16>
    %c4_64 = arith.constant 4 : index
    %c0_65 = arith.constant 0 : index
    %82 = vector.load %arg9[%c4_64, %c0_65] : memref<36x256xbf16, #tpu.memory_space<vmem>>, vector<4x256xbf16>
    tpu.vector_store %arg9[%c4_64, %c0_65], %81 {strides = array<i32>} : memref<36x256xbf16, #tpu.memory_space<vmem>>, vector<4x256xbf16>,
    %c0_66 = arith.constant 0 : index
    %c2_67 = arith.constant 2 : index
    %83 = vector.load %arg8[%c0_66, %c2_67] : memref<4x290xf32, #tpu.memory_space<vmem>>, vector<4x256xf32>
    %84 = vector.broadcast %8 : vector<1x256xf32> to vector<4x256xf32>
    %85 = arith.mulf %83, %84 : vector<4x256xf32>
    %86 = arith.truncf %85 : vector<4x256xf32> to vector<4x256xbf16>
    %c8_68 = arith.constant 8 : index
    %c0_69 = arith.constant 0 : index
    %87 = vector.load %arg9[%c8_68, %c0_69] : memref<36x256xbf16, #tpu.memory_space<vmem>>, vector<4x256xbf16>
    tpu.vector_store %arg9[%c8_68, %c0_69], %86 {strides = array<i32>} : memref<36x256xbf16, #tpu.memory_space<vmem>>, vector<4x256xbf16>,
    %c0_70 = arith.constant 0 : index
    %c16_71 = arith.constant 16 : index
    %88 = vector.load %arg8[%c0_70, %c16_71] : memref<4x290xf32, #tpu.memory_space<vmem>>, vector<4x256xf32>
    %89 = vector.broadcast %10 : vector<1x256xf32> to vector<4x256xf32>
    %90 = arith.mulf %88, %89 : vector<4x256xf32>
    %91 = arith.truncf %90 : vector<4x256xf32> to vector<4x256xbf16>
    %c12_72 = arith.constant 12 : index
    %c0_73 = arith.constant 0 : index
    %92 = vector.load %arg9[%c12_72, %c0_73] : memref<36x256xbf16, #tpu.memory_space<vmem>>, vector<4x256xbf16>
    tpu.vector_store %arg9[%c12_72, %c0_73], %91 {strides = array<i32>} : memref<36x256xbf16, #tpu.memory_space<vmem>>, vector<4x256xbf16>,
    %c0_74 = arith.constant 0 : index
    %c17_75 = arith.constant 17 : index
    %93 = vector.load %arg8[%c0_74, %c17_75] : memref<4x290xf32, #tpu.memory_space<vmem>>, vector<4x256xf32>
    %94 = arith.truncf %93 : vector<4x256xf32> to vector<4x256xbf16>
    %c16_76 = arith.constant 16 : index
    %c0_77 = arith.constant 0 : index
    %95 = vector.load %arg9[%c16_76, %c0_77] : memref<36x256xbf16, #tpu.memory_space<vmem>>, vector<4x256xbf16>
    tpu.vector_store %arg9[%c16_76, %c0_77], %94 {strides = array<i32>} : memref<36x256xbf16, #tpu.memory_space<vmem>>, vector<4x256xbf16>,
    %c0_78 = arith.constant 0 : index
    %c18_79 = arith.constant 18 : index
    %96 = vector.load %arg8[%c0_78, %c18_79] : memref<4x290xf32, #tpu.memory_space<vmem>>, vector<4x256xf32>
    %97 = vector.broadcast %12 : vector<1x256xf32> to vector<4x256xf32>
    %98 = arith.mulf %96, %97 : vector<4x256xf32>
    %99 = arith.truncf %98 : vector<4x256xf32> to vector<4x256xbf16>
    %c20_80 = arith.constant 20 : index
    %c0_81 = arith.constant 0 : index
    %100 = vector.load %arg9[%c20_80, %c0_81] : memref<36x256xbf16, #tpu.memory_space<vmem>>, vector<4x256xbf16>
    tpu.vector_store %arg9[%c20_80, %c0_81], %99 {strides = array<i32>} : memref<36x256xbf16, #tpu.memory_space<vmem>>, vector<4x256xbf16>,
    %c0_82 = arith.constant 0 : index
    %c32_83 = arith.constant 32 : index
    %101 = vector.load %arg8[%c0_82, %c32_83] : memref<4x290xf32, #tpu.memory_space<vmem>>, vector<4x256xf32>
    %102 = vector.broadcast %14 : vector<1x256xf32> to vector<4x256xf32>
    %103 = arith.mulf %101, %102 : vector<4x256xf32>
    %104 = arith.truncf %103 : vector<4x256xf32> to vector<4x256xbf16>
    %c24_84 = arith.constant 24 : index
    %c0_85 = arith.constant 0 : index
    %105 = vector.load %arg9[%c24_84, %c0_85] : memref<36x256xbf16, #tpu.memory_space<vmem>>, vector<4x256xbf16>
    tpu.vector_store %arg9[%c24_84, %c0_85], %104 {strides = array<i32>} : memref<36x256xbf16, #tpu.memory_space<vmem>>, vector<4x256xbf16>,
    %c0_86 = arith.constant 0 : index
    %c33_87 = arith.constant 33 : index
    %106 = vector.load %arg8[%c0_86, %c33_87] : memref<4x290xf32, #tpu.memory_space<vmem>>, vector<4x256xf32>
    %107 = vector.broadcast %16 : vector<1x256xf32> to vector<4x256xf32>
    %108 = arith.mulf %106, %107 : vector<4x256xf32>
    %109 = arith.truncf %108 : vector<4x256xf32> to vector<4x256xbf16>
    %c28_88 = arith.constant 28 : index
    %c0_89 = arith.constant 0 : index
    %110 = vector.load %arg9[%c28_88, %c0_89] : memref<36x256xbf16, #tpu.memory_space<vmem>>, vector<4x256xbf16>
    tpu.vector_store %arg9[%c28_88, %c0_89], %109 {strides = array<i32>} : memref<36x256xbf16, #tpu.memory_space<vmem>>, vector<4x256xbf16>,
    %c0_90 = arith.constant 0 : index
    %c34_91 = arith.constant 34 : index
    %111 = vector.load %arg8[%c0_90, %c34_91] : memref<4x290xf32, #tpu.memory_space<vmem>>, vector<4x256xf32>
    %112 = vector.broadcast %18 : vector<1x256xf32> to vector<4x256xf32>
    %113 = arith.mulf %111, %112 : vector<4x256xf32>
    %114 = arith.truncf %113 : vector<4x256xf32> to vector<4x256xbf16>
    %c32_92 = arith.constant 32 : index
    %c0_93 = arith.constant 0 : index
    %115 = vector.load %arg9[%c32_92, %c0_93] : memref<36x256xbf16, #tpu.memory_space<vmem>>, vector<4x256xbf16>
    tpu.vector_store %arg9[%c32_92, %c0_93], %114 {strides = array<i32>} : memref<36x256xbf16, #tpu.memory_space<vmem>>, vector<4x256xbf16>,
    %c0_94 = arith.constant 0 : index
    %c0_95 = arith.constant 0 : index
    %116 = vector.load %arg4[%c0_94, %c0_95] : memref<4x36xbf16, #tpu.memory_space<vmem>>, vector<4x36xbf16>
    %c0_96 = arith.constant 0 : index
    %c0_97 = arith.constant 0 : index
    %117 = vector.load %arg9[%c0_96, %c0_97] : memref<36x256xbf16, #tpu.memory_space<vmem>>, vector<36x256xbf16>
    %cst_98 = arith.constant dense<0.000000e+00> : vector<4x256xf32>
    %118 = tpu.matmul %116, %117, %cst_98 {dimension_numbers = #tpu.dot_dimension_numbers<[1], [0], [0], [1], [0, 0, 1, 1], [], []>} : vector<4x36xbf16>, vector<36x256xbf16>, vector<4x256xf32> -> vector<4x256xf32>
    %c0_99 = arith.constant 0 : index
    %c0_100 = arith.constant 0 : index
    %119 = vector.load %arg5[%c0_99, %c0_100] : memref<4x1xf32, #tpu.memory_space<vmem>>, vector<4x1xf32>
    %120 = vector.broadcast %119 : vector<4x1xf32> to vector<4x256xf32>
    %121 = arith.addf %118, %120 : vector<4x256xf32>
    %122 = arith.addf %121, %19 : vector<4x256xf32>
    %cst_101 = arith.constant 0.000000e+00 : f32
    %123 = vector.broadcast %cst_101 : f32 to vector<4x256xf32>
    %124 = arith.maximumf %122, %123 : vector<4x256xf32>
    %c0_102 = arith.constant 0 : index
    %c0_103 = arith.constant 0 : index
    %125 = vector.load %arg7[%c0_102, %c0_103] : memref<4x256xf32, #tpu.memory_space<vmem>>, vector<4x256xf32>
    tpu.vector_store %arg7[%c0_102, %c0_103], %124 {strides = array<i32>} : memref<4x256xf32, #tpu.memory_space<vmem>>, vector<4x256xf32>,
    return
  }
  func.func @transform_0(%arg0: i32) -> (i32, i32) {
    %c0_i32 = arith.constant 0 : i32
    %c0_i32_0 = arith.constant 0 : i32
    return %c0_i32, %arg0 : i32, i32
  }
  func.func @transform_1(%arg0: i32) -> (i32, i32) {
    %c0_i32 = arith.constant 0 : i32
    %c0_i32_0 = arith.constant 0 : i32
    %c0_i32_1 = arith.constant 0 : i32
    return %c0_i32, %c0_i32_0 : i32, i32
  }
  func.func @transform_2(%arg0: i32) -> (i32, i32) {
    %c0_i32 = arith.constant 0 : i32
    %c0_i32_0 = arith.constant 0 : i32
    %c0_i32_1 = arith.constant 0 : i32
    return %c0_i32, %c0_i32_0 : i32, i32
  }
  func.func @transform_3(%arg0: i32) -> (i32, i32) {
    %c0_i32 = arith.constant 0 : i32
    %c0_i32_0 = arith.constant 0 : i32
    %c0_i32_1 = arith.constant 0 : i32
    return %c0_i32, %c0_i32_0 : i32, i32
  }
  func.func @transform_4(%arg0: i32) -> (i32, i32) {
    %c0_i32 = arith.constant 0 : i32
    %c0_i32_0 = arith.constant 0 : i32
    %c0_i32_1 = arith.constant 0 : i32
    return %c0_i32, %c0_i32_0 : i32, i32
  }
  func.func @transform_5(%arg0: i32) -> (i32, i32, i32) {
    %c0_i32 = arith.constant 0 : i32
    %c0_i32_0 = arith.constant 0 : i32
    %c0_i32_1 = arith.constant 0 : i32
    %c0_i32_2 = arith.constant 0 : i32
    return %c0_i32, %c0_i32_0, %c0_i32_1 : i32, i32, i32
  }
  func.func @transform_6(%arg0: i32) -> (i32, i32) {
    %c0_i32 = arith.constant 0 : i32
    %c0_i32_0 = arith.constant 0 : i32
    return %c0_i32, %arg0 : i32, i32
  }
}

</mosaic_0001>

<llo_original>
// kernel: resblock_pallas.1
$region0: #{resblock_pallas.1}
  #allocation0 [shape = 'u32[]', space=smem, size = 0x4, offset = 0x4, fixed_abs, tag = 'smem constant byte address 0x4 - core index']
  #allocation1 [shape = 'u32[144,128]{1,0:T(1,128)}', space=vmem, size = 0x12000, scoped, tag = 'internal scratch']
  #allocation2 [shape = 'f32[4,290]{1,0:T(4,128)}', space=vmem, size = 0x1800, scoped, tag = 'scratch operand']
  #allocation3 [shape = 'bf16[36,256]{1,0:T(8,128)(2,1)}', space=vmem, size = 0x5000, scoped, tag = 'scratch operand']
  %s0 = inlined_call_operand.vmem [shape: f32[4,512], index: 0, kind: input, shape index: {}]
  %s1 = inlined_call_operand.vmem [shape: bf16[4,36], index: 1, kind: input, shape index: {}]
  %s2 = inlined_call_operand.vmem [shape: f32[4,1], index: 2, kind: input, shape index: {}]
  %s3 = inlined_call_operand.vmem [shape: bf16[4,36], index: 3, kind: input, shape index: {}]
  %s4 = inlined_call_operand.vmem [shape: f32[4,1], index: 4, kind: input, shape index: {}]
  %s5 = inlined_call_operand.vmem [shape: f32[9,1,256], index: 5, kind: input, shape index: {}]
  %s6 = inlined_call_operand.vmem [shape: f32[4,512], index: 6, kind: output, shape index: {}]
  %s7 = sld [smem:[#allocation0]]
  $region57: #{resblock_pallas.1} parent=0
    _
  %s9 = ssub.s32 1, %s7
  %s10 = scalar_select 0, %s9, %s7
  loop: start=0, step=1, limit=4
  $region2: #{resblock_pallas.1} parent=0 // loop_pre_header
    _
  $region3: #{resblock_pallas.1} parent=0 // loop_header
    %s12 = sphi 0, %s16
    %p13 = scmp.ge.s32.totalorder %s12, 4
    %s22 = sphi 0, %s24
    %s25 = sphi 0, %s22
    %s26 = sphi 0, %s25
    %s42 = sphi 0, %s26
    %s46 = sphi 0, %s46
    %s48 = sphi 0, %s46
    %s49 = sphi 0, %s48
    %s63 = sphi 0, %s49
    %s67 = sphi 0, %s67
    %s69 = sphi 0, %s67
    %s70 = sphi 0, %s69
    %s84 = sphi 0, %s70
    %s88 = sphi 0, %s88
    %s90 = sphi 0, %s88
    %s91 = sphi 0, %s90
    %s105 = sphi 0, %s91
    %s109 = sphi 0, %s109
    %s111 = sphi 0, %s109
    %s112 = sphi 0, %s111
    %s126 = sphi 0, %s112
    %s130 = sphi 0, %s130
    %s132 = sphi 0, %s130
    %s133 = sphi 0, %s132
    %s147 = sphi 0, %s133
    %s153 = sphi 0, %s155
    %s156 = sphi 0, %s153
    %s157 = sphi 0, %s156
    %s173 = sphi 0, %s157
  $region4: #{resblock_pallas.1} parent=0 // loop_header_branch
    %15 = sbr.rel (%p13) target = $region8
  $region5: #{resblock_pallas.1} parent=0 // loop_body
    %s17 = ssub.s32 %s12, 1
    %s18 = ssub.s32 %s12, 2
    %s19 = sadd.s32 %s12, 1
    %s20 = ssub.s32 %s12, %s19
    %p21 = scmp.eq.s32.totalorder %s20, 0
    %s23 = sadd.s32 %s22, 1
    %s24 = scalar_select %p21, %s22, %s23
    %p27 = pneg %p21
    %p28 = scmp.eq.s32.totalorder %s12, 1
    %p29 = por %p27, %p28
    %p30 = scmp.ne.s32.totalorder %s22, %s25
    %p31 = scmp.eq.s32.totalorder %s12, 0
    %p32 = por %p30, %p31
    %p33 = scmp.ne.s32.totalorder %s22, %s25
    %p34 = scmp.eq.s32.totalorder %s17, 1
    %p35 = por %p33, %p34
    %p36 = scmp.ne.s32.totalorder %s25, %s26
    %p37 = scmp.eq.s32.totalorder %s17, 0
    %p38 = por %p36, %p37
    %p39 = scmp.ne.s32.totalorder %s25, %s26
    %p40 = scmp.eq.s32.totalorder %s18, 1
    %p41 = por %p39, %p40
    %p43 = scmp.ne.s32.totalorder %s26, %s42
    %p44 = scmp.eq.s32.totalorder %s18, 0
    %p45 = por %p43, %p44
    %s47 = sadd.s32 %s46, 1
    %p50 = scmp.eq.s32.totalorder %s12, 1
    %p51 = scmp.ne.s32.totalorder %s46, %s48
    %p52 = scmp.eq.s32.totalorder %s12, 0
    %p53 = por %p51, %p52
    %p54 = scmp.ne.s32.totalorder %s46, %s48
    %p55 = scmp.eq.s32.totalorder %s17, 1
    %p56 = por %p54, %p55
    %p57 = scmp.ne.s32.totalorder %s48, %s49
    %p58 = scmp.eq.s32.totalorder %s17, 0
    %p59 = por %p57, %p58
    %p60 = scmp.ne.s32.totalorder %s48, %s49
    %p61 = scmp.eq.s32.totalorder %s18, 1
    %p62 = por %p60, %p61
    %p64 = scmp.ne.s32.totalorder %s49, %s63
    %p65 = scmp.eq.s32.totalorder %s18, 0
    %p66 = por %p64, %p65
    %s68 = sadd.s32 %s67, 1
    %p71 = scmp.eq.s32.totalorder %s12, 1
    %p72 = scmp.ne.s32.totalorder %s67, %s69
    %p73 = scmp.eq.s32.totalorder %s12, 0
    %p74 = por %p72, %p73
    %p75 = scmp.ne.s32.totalorder %s67, %s69
    %p76 = scmp.eq.s32.totalorder %s17, 1
    %p77 = por %p75, %p76
    %p78 = scmp.ne.s32.totalorder %s69, %s70
    %p79 = scmp.eq.s32.totalorder %s17, 0
    %p80 = por %p78, %p79
    %p81 = scmp.ne.s32.totalorder %s69, %s70
    %p82 = scmp.eq.s32.totalorder %s18, 1
    %p83 = por %p81, %p82
    %p85 = scmp.ne.s32.totalorder %s70, %s84
    %p86 = scmp.eq.s32.totalorder %s18, 0
    %p87 = por %p85, %p86
    %s89 = sadd.s32 %s88, 1
    %p92 = scmp.eq.s32.totalorder %s12, 1
    %p93 = scmp.ne.s32.totalorder %s88, %s90
    %p94 = scmp.eq.s32.totalorder %s12, 0
    %p95 = por %p93, %p94
    %p96 = scmp.ne.s32.totalorder %s88, %s90
    %p97 = scmp.eq.s32.totalorder %s17, 1
    %p98 = por %p96, %p97
    %p99 = scmp.ne.s32.totalorder %s90, %s91
    %p100 = scmp.eq.s32.totalorder %s17, 0
    %p101 = por %p99, %p100
    %p102 = scmp.ne.s32.totalorder %s90, %s91
    %p103 = scmp.eq.s32.totalorder %s18, 1
    %p104 = por %p102, %p103
    %p106 = scmp.ne.s32.totalorder %s91, %s105
    %p107 = scmp.eq.s32.totalorder %s18, 0
    %p108 = por %p106, %p107
    %s110 = sadd.s32 %s109, 1
    %p113 = scmp.eq.s32.totalorder %s12, 1
    %p114 = scmp.ne.s32.totalorder %s109, %s111
    %p115 = scmp.eq.s32.totalorder %s12, 0
    %p116 = por %p114, %p115
    %p117 = scmp.ne.s32.totalorder %s109, %s111
    %p118 = scmp.eq.s32.totalorder %s17, 1
    %p119 = por %p117, %p118
    %p120 = scmp.ne.s32.totalorder %s111, %s112
    %p121 = scmp.eq.s32.totalorder %s17, 0
    %p122 = por %p120, %p121
    %p123 = scmp.ne.s32.totalorder %s111, %s112
    %p124 = scmp.eq.s32.totalorder %s18, 1
    %p125 = por %p123, %p124
    %p127 = scmp.ne.s32.totalorder %s112, %s126
    %p128 = scmp.eq.s32.totalorder %s18, 0
    %p129 = por %p127, %p128
    %s131 = sadd.s32 %s130, 1
    %p134 = scmp.eq.s32.totalorder %s12, 1
    %p135 = scmp.ne.s32.totalorder %s130, %s132
    %p136 = scmp.eq.s32.totalorder %s12, 0
    %p137 = por %p135, %p136
    %p138 = scmp.ne.s32.totalorder %s130, %s132
    %p139 = scmp.eq.s32.totalorder %s17, 1
    %p140 = por %p138, %p139
    %p141 = scmp.ne.s32.totalorder %s132, %s133
    %p142 = scmp.eq.s32.totalorder %s17, 0
    %p143 = por %p141, %p142
    %p144 = scmp.ne.s32.totalorder %s132, %s133
    %p145 = scmp.eq.s32.totalorder %s18, 1
    %p146 = por %p144, %p145
    %p148 = scmp.ne.s32.totalorder %s133, %s147
    %p149 = scmp.eq.s32.totalorder %s18, 0
    %p150 = por %p148, %p149
    %s151 = ssub.s32 %s12, %s19
    %p152 = scmp.eq.s32.totalorder %s151, 0
    %s154 = sadd.s32 %s153, 1
    %s155 = scalar_select %p152, %s153, %s154
    %p158 = pneg %p152
    %p159 = scmp.eq.s32.totalorder %s12, 1
    %p160 = por %p158, %p159
    %p161 = scmp.ne.s32.totalorder %s153, %s156
    %p162 = scmp.eq.s32.totalorder %s12, 0
    %p163 = por %p161, %p162
    %p164 = scmp.ne.s32.totalorder %s153, %s156
    %p165 = scmp.eq.s32.totalorder %s17, 1
    %p166 = por %p164, %p165
    %p167 = scmp.ne.s32.totalorder %s156, %s157
    %p168 = scmp.eq.s32.totalorder %s17, 0
    %p169 = por %p167, %p168
    %p170 = scmp.ne.s32.totalorder %s156, %s157
    %p171 = scmp.eq.s32.totalorder %s18, 1
    %p172 = por %p170, %p171
    %p174 = scmp.ne.s32.totalorder %s157, %s173
    %p175 = scmp.eq.s32.totalorder %s18, 0
    %p176 = por %p174, %p175
    %p177 = scmp.le.s32.totalorder 1, %s12
    %p178 = scmp.lt.s32.totalorder %s12, 3
    %p179 = pnand %p177, %p178
    %p180 = pneg %p179
    // Predicated region
    $region9: #{resblock_pallas.1} parent=5 // pred_check
      _
    $region10: #{resblock_pallas.1} parent=5 // pred_check_branch
      %182 = sbr.rel (%p179) target = $region12
    $region11: #{resblock_pallas.1} parent=5 // pred_region
      %s183 = ssub.s32 %s12, 1
      // Predicated region
      $region13: #{resblock_pallas.1} parent=11 // pred_check
        %p184 = pneg %p59
      $region14: #{resblock_pallas.1} parent=11 // pred_check_branch
        %186 = sbr.rel (%p184) target = $region16
      $region15: #{resblock_pallas.1} parent=11 // pred_region
        _
      $region16: #{resblock_pallas.1} parent=11 // pred_fallthru
        _
      // Predicated region
      $region17: #{resblock_pallas.1} parent=11 // pred_check
        %p187 = pneg %p80
      $region18: #{resblock_pallas.1} parent=11 // pred_check_branch
        %189 = sbr.rel (%p187) target = $region20
      $region19: #{resblock_pallas.1} parent=11 // pred_region
        _
      $region20: #{resblock_pallas.1} parent=11 // pred_fallthru
        _
      // Predicated region
      $region21: #{resblock_pallas.1} parent=11 // pred_check
        %p190 = pneg %p101
      $region22: #{resblock_pallas.1} parent=11 // pred_check_branch
        %192 = sbr.rel (%p190) target = $region24
      $region23: #{resblock_pallas.1} parent=11 // pred_region
        _
      $region24: #{resblock_pallas.1} parent=11 // pred_fallthru
        _
      // Predicated region
      $region25: #{resblock_pallas.1} parent=11 // pred_check
        %p193 = pneg %p122
      $region26: #{resblock_pallas.1} parent=11 // pred_check_branch
        %195 = sbr.rel (%p193) target = $region28
      $region27: #{resblock_pallas.1} parent=11 // pred_region
        _
      $region28: #{resblock_pallas.1} parent=11 // pred_fallthru
        _
      // Predicated region
      $region29: #{resblock_pallas.1} parent=11 // pred_check
        %p196 = pneg %p143
      $region30: #{resblock_pallas.1} parent=11 // pred_check_branch
        %198 = sbr.rel (%p196) target = $region32
      $region31: #{resblock_pallas.1} parent=11 // pred_region
        _
      $region32: #{resblock_pallas.1} parent=11 // pred_fallthru
        _
    $region12: #{resblock_pallas.1} parent=5 // pred_fallthru
      _
    %p199 = scmp.lt.s32.totalorder %s12, 2
    // Predicated region
    $region33: #{resblock_pallas.1} parent=5 // pred_check
      %p200 = pneg %p199
    $region34: #{resblock_pallas.1} parent=5 // pred_check_branch
      %202 = sbr.rel (%p200) target = $region36
    $region35: #{resblock_pallas.1} parent=5 // pred_region
      // Predicated region
      $region37: #{resblock_pallas.1} parent=35 // pred_check
        %p203 = pneg %p32
      $region38: #{resblock_pallas.1} parent=35 // pred_check_branch
        %205 = sbr.rel (%p203) target = $region40
      $region39: #{resblock_pallas.1} parent=35 // pred_region
        %s206 = smul.u32 2, %s12
        %p207 = scmp.lt.s32.totalorder %s206, 3
        %s208 = scalar_select %p207, %s206, 3
        %s209 = smul.addr %s208, 4
        %s210 = scalar_lea.vmem %s0, %s209
        %s211 = smul.u32 2, %s12
      $region40: #{resblock_pallas.1} parent=35 // pred_fallthru
        _
    $region36: #{resblock_pallas.1} parent=5 // pred_fallthru
      _
    %p212 = scmp.le.s32.totalorder 1, %s12
    %p213 = scmp.lt.s32.totalorder %s12, 3
    %p214 = pnand %p212, %p213
    %p215 = pneg %p214
    // Predicated region
    $region41: #{resblock_pallas.1} parent=5 // pred_check
      _
    $region42: #{resblock_pallas.1} parent=5 // pred_check_branch
      %217 = sbr.rel (%p214) target = $region44
    $region43: #{resblock_pallas.1} parent=5 // pred_region
      %s218 = ssub.s32 %s12, 1
      %s219 = smul.u32 2, %s17
      %p220 = scmp.lt.s32.totalorder %s219, 3
      %s221 = scalar_select %p220, %s219, 3
      %s222 = smul.addr %s221, 4
      %s223 = scalar_lea.vmem %s0, %s222
      %p224 = pneg %p38
      %p225 = pneg %p35
      %p226 = pneg %p59
      %p227 = pneg %p56
      %p228 = pneg %p80
      %p229 = pneg %p77
      %p230 = pneg %p101
      %p231 = pneg %p98
      %p232 = pneg %p122
      %p233 = pneg %p119
      %p234 = pneg %p143
      %p235 = pneg %p140
      %p236 = pneg %p169
      %p237 = pneg %p166
      %s238 = smul.u32 2, %s17
      %p239 = scmp.lt.s32.totalorder %s238, 3
      %s240 = scalar_select %p239, %s238, 3
      %s241 = smul.addr %s240, 4
      %s242 = scalar_lea.vmem %s6, %s241
      %s243 = smul.u32 2, %s17
      %p244 = scmp.lt.s32.totalorder %s243, 3
      %s245 = scalar_select %p244, %s243, 3
      %s246 = smul.addr %s245, 4
      %s247 = scalar_lea.vmem %s0, %s246
      %s248 = smul.u32 2, %s17
      %s249 = smul.u32 2, %s17
      %p250 = scmp.lt.s32.totalorder %s249, 3
      %s251 = scalar_select %p250, %s249, 3
      %s252 = smul.addr %s251, 4
      %s253 = scalar_lea.vmem %s6, %s252
      %s254 = smul.u32 2, %s17
      %vm256 = vcmask 134144
      %257 = vst.msk [vmem:[#allocation2] sm:$0xf] %vm256, 0.0
      %vm258 = vcmask 273544
      %259 = vst.msk [vmem:[#allocation2 + $0x8] sm:$0xf] %vm258, 0.0
      %v260 = vld [vmem:[%s5] sm:$0x3]
      %s261 = scalar_lea.vmem %s5, 2
      %v262 = vld [vmem:[%s261] sm:$0x3]
      %s263 = scalar_lea.vmem %s5, 4
      %v264 = vld [vmem:[%s263] sm:$0x3]
      %s265 = scalar_lea.vmem %s5, 6
      %v266 = vld [vmem:[%s265] sm:$0x3]
      %s267 = scalar_lea.vmem %s5, 10
      %v268 = vld [vmem:[%s267] sm:$0x3]
      %s269 = scalar_lea.vmem %s5, 12
      %v270 = vld [vmem:[%s269] sm:$0x3]
      %s271 = scalar_lea.vmem %s5, 14
      %v272 = vld [vmem:[%s271] sm:$0x3]
      %s273 = scalar_lea.vmem %s5, 16
      %v274 = vld [vmem:[%s273] sm:$0x3]
      %v275 = vld [vmem:[%s247] sm:$0xff]
      %277 = vrot.lane.b32.xlu0 %v275, 17
      %v278 = vpop.permute.xlu0 %277
      %v279 = vrot.slane %v278, 4
      %vm280 = vcmask 138240
      %v281 = vsel %vm280, %v279, %v278
      %vm284 = vcmask 1043592
      %vm285 = vcmask 1047556
      %vm286 = vmor %vm285, %vm284
      %287 = vst.msk [vmem:[#allocation2] sm:$0xff] %vm286, %v281
      %288 = vst.msk [vmem:[#allocation2 + $0x8] sm:$0xf] %vm256, %v279
      %v289 = vld [vmem:[#allocation2] sm:$0xff]
      %v291 = vlaneseq
      %v292 = vshrl.u32 %v291, 7
      %v293 = vsub.s32 0, %v292
      %v294 = vrot.slane %v260, %v293
      %v295 = vlaneseq
      %v296 = vshrl.u32 %v295, 7
      %v297 = vsub.s32 1, %v296
      %v298 = vrot.slane %v260, %v297
      %v299 = vcombine.low %v294, %v298
      %v301 = vmul.f32 %v289, %v299
      %v303 = vcombine.high %v301, %v301
      %v305 = vpack.c.bf16 %v301, %v301
      %v306 = vpack.c.bf16 %v303, %v303
      %v309 = vunpack.c.l.b16 %v305
      %v310 = vunpack.c.l.b16 %v306
      %v311 = vpack.c.b16 %v310, %v309
      %313 = vst [vmem:[#allocation3] sm:$0x33] %v311
      %v314 = vld [vmem:[#allocation2] sm:$0xff]
      %v315 = vld [vmem:[#allocation2 + $0x8] sm:$0xf]
      %v317 = vlaneseq
      %v318 = vshrl.u32 %v317, 7
      %v319 = vsub.s32 0, %v318
      %v320 = vrot.slane %v262, %v319
      %v321 = vlaneseq
      %v322 = vshrl.u32 %v321, 7
      %v323 = vsub.s32 1, %v322
      %v324 = vrot.slane %v262, %v323
      %v325 = vcombine.low %v320, %v324
      %326 = vrot.lane.b32.xlu0 %v325, 1
      %v327 = vpop.permute.xlu0 %326
      %v328 = vrot.slane %v327, 4
      %vm329 = vcmask 7168
      %v330 = vsel %vm329, %v328, %v327
      %v333 = vmul.f32 %v314, %v330
      %v334 = vmul.f32 %v315, %v328
      %v336 = vcombine.high %v333, %v333
      %v338 = vpack.c.bf16 %v333, %v333
      %v339 = vpack.c.bf16 %v336, %v336
      %v340 = vpack.c.bf16 %v334, %v334
      %v344 = vunpack.c.l.b16 %v338
      %v345 = vunpack.c.l.b16 %v339
      %v346 = vunpack.c.l.b16 %v340
      %v347 = vpack.c.b16 %v345, %v344
      %v348 = vpack.c.b16 %v346, %v346
      %v349 = vrot.slane %v347, 6
      %v350 = vrot.slane %v348, 6
      %351 = vrot.lane.b32.xlu0 %v349, 127
      %v352 = vpop.permute.xlu0 %351
      %353 = vrot.lane.b32.xlu0 %v350, 127
      %v354 = vpop.permute.xlu0 %353
      %v355 = vrot.slane %v352, 4
      %v356 = vrot.slane %v354, 4
      %vm357 = vcmask 1043456
      %v358 = vsel %vm357, %v355, %v356
      %vm359 = vcmask 1039360
      %v360 = vsel %vm359, %v352, %v358
      %362 = vst [vmem:[#allocation3] sm:$0xcc] %v360
      %v363 = vld [vmem:[#allocation2] sm:$0xff]
      %v364 = vld [vmem:[#allocation2 + $0x8] sm:$0xf]
      %v366 = vlaneseq
      %v367 = vshrl.u32 %v366, 7
      %v368 = vsub.s32 0, %v367
      %v369 = vrot.slane %v264, %v368
      %v370 = vlaneseq
      %v371 = vshrl.u32 %v370, 7
      %v372 = vsub.s32 1, %v371
      %v373 = vrot.slane %v264, %v372
      %v374 = vcombine.low %v369, %v373
      %375 = vrot.lane.b32.xlu0 %v374, 2
      %v376 = vpop.permute.xlu0 %375
      %v377 = vrot.slane %v376, 4
      %vm378 = vcmask 15360
      %v379 = vsel %vm378, %v377, %v376
      %v382 = vmul.f32 %v363, %v379
      %v383 = vmul.f32 %v364, %v377
      %v385 = vcombine.high %v382, %v382
      %v387 = vpack.c.bf16 %v382, %v382
      %v388 = vpack.c.bf16 %v385, %v385
      %v389 = vpack.c.bf16 %v383, %v383
      %v393 = vunpack.c.l.b16 %v387
      %v394 = vunpack.c.l.b16 %v388
      %v395 = vunpack.c.l.b16 %v389
      %v396 = vpack.c.b16 %v394, %v393
      %v397 = vpack.c.b16 %v395, %v395
      %398 = vrot.lane.b32.xlu0 %v396, 126
      %v399 = vpop.permute.xlu0 %398
      %400 = vrot.lane.b32.xlu0 %v397, 126
      %v401 = vpop.permute.xlu0 %400
      %v402 = vrot.slane %v399, 4
      %v403 = vrot.slane %v401, 4
      %v404 = vsel %vm357, %v402, %v403
      %vm405 = vcmask 1031168
      %v406 = vsel %vm405, %v399, %v404
      %408 = vst [vmem:[#allocation3 + $0x8] sm:$0x33] %v406
      %v409 = vld [vmem:[#allocation2] sm:$0xff]
      %v410 = vld [vmem:[#allocation2 + $0x8] sm:$0xf]
      %v412 = vlaneseq
      %v413 = vshrl.u32 %v412, 7
      %v414 = vsub.s32 0, %v413
      %v415 = vrot.slane %v266, %v414
      %v416 = vlaneseq
      %v417 = vshrl.u32 %v416, 7
      %v418 = vsub.s32 1, %v417
      %v419 = vrot.slane %v266, %v418
      %v420 = vcombine.low %v415, %v419
      %421 = vrot.lane.b32.xlu0 %v420, 16
      %v422 = vpop.permute.xlu0 %421
      %v423 = vrot.slane %v422, 4
      %vm424 = vcmask 130048
      %v425 = vsel %vm424, %v423, %v422
      %v428 = vmul.f32 %v409, %v425
      %v429 = vmul.f32 %v410, %v423
      %v431 = vcombine.high %v428, %v428
      %v433 = vpack.c.bf16 %v428, %v428
      %v434 = vpack.c.bf16 %v431, %v431
      %v435 = vpack.c.bf16 %v429, %v429
      %v439 = vunpack.c.l.b16 %v433
      %v440 = vunpack.c.l.b16 %v434
      %v441 = vunpack.c.l.b16 %v435
      %v442 = vpack.c.b16 %v440, %v439
      %v443 = vpack.c.b16 %v441, %v441
      %v444 = vrot.slane %v442, 6
      %v445 = vrot.slane %v443, 6
      %446 = vrot.lane.b32.xlu0 %v444, 112
      %v447 = vpop.permute.xlu0 %446
      %448 = vrot.lane.b32.xlu0 %v445, 112
      %v449 = vpop.permute.xlu0 %448
      %v450 = vrot.slane %v447, 4
      %v451 = vrot.slane %v449, 4
      %v452 = vsel %vm357, %v450, %v451
      %vm453 = vcmask 916480
      %v454 = vsel %vm453, %v447, %v452
      %456 = vst [vmem:[#allocation3 + $0x8] sm:$0xcc] %v454
      %v457 = vld [vmem:[#allocation2] sm:$0xff]
      %v458 = vld [vmem:[#allocation2 + $0x8] sm:$0xf]
      %v460 = vcombine.high %v457, %v457
      %v462 = vpack.c.bf16 %v457, %v457
      %v463 = vpack.c.bf16 %v460, %v460
      %v464 = vpack.c.bf16 %v458, %v458
      %v468 = vunpack.c.l.b16 %v462
      %v469 = vunpack.c.l.b16 %v463
      %v470 = vunpack.c.l.b16 %v464
      %v471 = vpack.c.b16 %v469, %v468
      %v472 = vpack.c.b16 %v470, %v470
      %473 = vrot.lane.b32.xlu0 %v471, 111
      %v474 = vpop.permute.xlu0 %473
      %475 = vrot.lane.b32.xlu0 %v472, 111
      %v476 = vpop.permute.xlu0 %475
      %v477 = vrot.slane %v474, 4
      %v478 = vrot.slane %v476, 4
      %v479 = vsel %vm357, %v477, %v478
      %vm480 = vcmask 908288
      %v481 = vsel %vm480, %v474, %v479
      %483 = vst [vmem:[#allocation3 + $0x10] sm:$0x33] %v481
      %v484 = vld [vmem:[#allocation2] sm:$0xff]
      %v485 = vld [vmem:[#allocation2 + $0x8] sm:$0xf]
      %v487 = vlaneseq
      %v488 = vshrl.u32 %v487, 7
      %v489 = vsub.s32 0, %v488
      %v490 = vrot.slane %v268, %v489
      %v491 = vlaneseq
      %v492 = vshrl.u32 %v491, 7
      %v493 = vsub.s32 1, %v492
      %v494 = vrot.slane %v268, %v493
      %v495 = vcombine.low %v490, %v494
      %496 = vrot.lane.b32.xlu0 %v495, 18
      %v497 = vpop.permute.xlu0 %496
      %v498 = vrot.slane %v497, 4
      %vm499 = vcmask 146432
      %v500 = vsel %vm499, %v498, %v497
      %v503 = vmul.f32 %v484, %v500
      %v504 = vmul.f32 %v485, %v498
      %v506 = vcombine.high %v503, %v503
      %v508 = vpack.c.bf16 %v503, %v503
      %v509 = vpack.c.bf16 %v506, %v506
      %v510 = vpack.c.bf16 %v504, %v504
      %v514 = vunpack.c.l.b16 %v508
      %v515 = vunpack.c.l.b16 %v509
      %v516 = vunpack.c.l.b16 %v510
      %v517 = vpack.c.b16 %v515, %v514
      %v518 = vpack.c.b16 %v516, %v516
      %v519 = vrot.slane %v517, 6
      %v520 = vrot.slane %v518, 6
      %521 = vrot.lane.b32.xlu0 %v519, 110
      %v522 = vpop.permute.xlu0 %521
      %523 = vrot.lane.b32.xlu0 %v520, 110
      %v524 = vpop.permute.xlu0 %523
      %v525 = vrot.slane %v522, 4
      %v526 = vrot.slane %v524, 4
      %v527 = vsel %vm357, %v525, %v526
      %vm528 = vcmask 900096
      %v529 = vsel %vm528, %v522, %v527
      %531 = vst [vmem:[#allocation3 + $0x10] sm:$0xcc] %v529
      %v532 = vld [vmem:[#allocation2] sm:$0xff]
      %v533 = vld [vmem:[#allocation2 + $0x8] sm:$0xf]
      %v535 = vlaneseq
      %v536 = vshrl.u32 %v535, 7
      %v537 = vsub.s32 0, %v536
      %v538 = vrot.slane %v270, %v537
      %v539 = vlaneseq
      %v540 = vshrl.u32 %v539, 7
      %v541 = vsub.s32 1, %v540
      %v542 = vrot.slane %v270, %v541
      %v543 = vcombine.low %v538, %v542
      %544 = vrot.lane.b32.xlu0 %v543, 32
      %v545 = vpop.permute.xlu0 %544
      %v546 = vrot.slane %v545, 4
      %vm547 = vcmask 261120
      %v548 = vsel %vm547, %v546, %v545
      %v551 = vmul.f32 %v532, %v548
      %v552 = vmul.f32 %v533, %v546
      %v554 = vcombine.high %v551, %v551
      %v556 = vpack.c.bf16 %v551, %v551
      %v557 = vpack.c.bf16 %v554, %v554
      %v558 = vpack.c.bf16 %v552, %v552
      %v562 = vunpack.c.l.b16 %v556
      %v563 = vunpack.c.l.b16 %v557
      %v564 = vunpack.c.l.b16 %v558
      %v565 = vpack.c.b16 %v563, %v562
      %v566 = vpack.c.b16 %v564, %v564
      %567 = vrot.lane.b32.xlu0 %v565, 96
      %v568 = vpop.permute.xlu0 %567
      %569 = vrot.lane.b32.xlu0 %v566, 96
      %v570 = vpop.permute.xlu0 %569
      %v571 = vrot.slane %v568, 4
      %v572 = vrot.slane %v570, 4
      %v573 = vsel %vm357, %v571, %v572
      %vm574 = vcmask 785408
      %v575 = vsel %vm574, %v568, %v573
      %577 = vst [vmem:[#allocation3 + $0x18] sm:$0x33] %v575
      %v578 = vld [vmem:[#allocation2] sm:$0xff]
      %v579 = vld [vmem:[#allocation2 + $0x8] sm:$0xf]
      %v581 = vlaneseq
      %v582 = vshrl.u32 %v581, 7
      %v583 = vsub.s32 0, %v582
      %v584 = vrot.slane %v272, %v583
      %v585 = vlaneseq
      %v586 = vshrl.u32 %v585, 7
      %v587 = vsub.s32 1, %v586
      %v588 = vrot.slane %v272, %v587
      %v589 = vcombine.low %v584, %v588
      %590 = vrot.lane.b32.xlu0 %v589, 33
      %v591 = vpop.permute.xlu0 %590
      %v592 = vrot.slane %v591, 4
      %vm593 = vcmask 269312
      %v594 = vsel %vm593, %v592, %v591
      %v597 = vmul.f32 %v578, %v594
      %v598 = vmul.f32 %v579, %v592
      %v600 = vcombine.high %v597, %v597
      %v602 = vpack.c.bf16 %v597, %v597
      %v603 = vpack.c.bf16 %v600, %v600
      %v604 = vpack.c.bf16 %v598, %v598
      %v608 = vunpack.c.l.b16 %v602
      %v609 = vunpack.c.l.b16 %v603
      %v610 = vunpack.c.l.b16 %v604
      %v611 = vpack.c.b16 %v609, %v608
      %v612 = vpack.c.b16 %v610, %v610
      %v613 = vrot.slane %v611, 6
      %v614 = vrot.slane %v612, 6
      %615 = vrot.lane.b32.xlu0 %v613, 95
      %v616 = vpop.permute.xlu0 %615
      %617 = vrot.lane.b32.xlu0 %v614, 95
      %v618 = vpop.permute.xlu0 %617
      %v619 = vrot.slane %v616, 4
      %v620 = vrot.slane %v618, 4
      %v621 = vsel %vm357, %v619, %v620
      %vm622 = vcmask 777216
      %v623 = vsel %vm622, %v616, %v621
      %625 = vst [vmem:[#allocation3 + $0x18] sm:$0xcc] %v623
      %v626 = vld [vmem:[#allocation2] sm:$0xff]
      %v627 = vld [vmem:[#allocation2 + $0x8] sm:$0xf]
      %v629 = vlaneseq
      %v630 = vshrl.u32 %v629, 7
      %v631 = vsub.s32 0, %v630
      %v632 = vrot.slane %v274, %v631
      %v633 = vlaneseq
      %v634 = vshrl.u32 %v633, 7
      %v635 = vsub.s32 1, %v634
      %v636 = vrot.slane %v274, %v635
      %v637 = vcombine.low %v632, %v636
      %638 = vrot.lane.b32.xlu0 %v637, 34
      %v639 = vpop.permute.xlu0 %638
      %v640 = vrot.slane %v639, 4
      %vm641 = vcmask 277504
      %v642 = vsel %vm641, %v640, %v639
      %v645 = vmul.f32 %v626, %v642
      %v646 = vmul.f32 %v627, %v640
      %v648 = vcombine.high %v645, %v645
      %v650 = vpack.c.bf16 %v645, %v645
      %v651 = vpack.c.bf16 %v648, %v648
      %v652 = vpack.c.bf16 %v646, %v646
      %v656 = vunpack.c.l.b16 %v650
      %v657 = vunpack.c.l.b16 %v651
      %v658 = vunpack.c.l.b16 %v652
      %v659 = vpack.c.b16 %v657, %v656
      %v660 = vpack.c.b16 %v658, %v658
      %661 = vrot.lane.b32.xlu0 %v659, 94
      %v662 = vpop.permute.xlu0 %661
      %663 = vrot.lane.b32.xlu0 %v660, 94
      %v664 = vpop.permute.xlu0 %663
      %v665 = vrot.slane %v662, 4
      %v666 = vrot.slane %v664, 4
      %v667 = vsel %vm357, %v665, %v666
      %vm668 = vcmask 769024
      %v669 = vsel %vm668, %v662, %v667
      %671 = vst [vmem:[#allocation3 + $0x20] sm:$0x33] %v669
      %v672 = vld [vmem:[%s1] sm:$0x3]
      %v673 = vld [vmem:[#allocation3] sm:$0xff]
      %v674 = vld [vmem:[#allocation3 + $0x8] sm:$0xff]
      %v675 = vld [vmem:[#allocation3 + $0x10] sm:$0xff]
      %v676 = vld [vmem:[#allocation3 + $0x18] sm:$0xff]
      %v677 = vld [vmem:[#allocation3 + $0x20] sm:$0x33]
      %v678 = vld [vmem:[%s2] sm:$0xf]
      %680 = vset.pattern.permute.xlu0 0
      %681 = vperm.xlu0 %680, %v678
      %v682 = vpop.permute.xlu0 %681
      %v689 = vunpack.c.l.b16 %v673
      %v690 = vunpack.c.h.b16 %v673
      %v691 = vunpack.c.l.b16 %v674
      %v692 = vunpack.c.h.b16 %v674
      %v693 = vunpack.c.l.b16 %v675
      %v694 = vunpack.c.h.b16 %v675
      %v695 = vunpack.c.l.b16 %v676
      %v696 = vunpack.c.h.b16 %v676
      %v697 = vunpack.c.l.b16 %v677
      %v698 = vunpack.c.h.b16 %v677
      %v699 = vpack.c.b16 %v691, %v689
      %v700 = vpack.c.b16 %v692, %v690
      %v701 = vpack.c.b16 %v695, %v693
      %v702 = vpack.c.b16 %v696, %v694
      %v703 = vpack.c.b16 %v697, %v697
      %v704 = vpack.c.b16 %v698, %v698
      %vm709 = vcmask 293888
      %v711 = vsel %vm709, %v672, 0
      %vm713 = vcmask 1041408
      %v715 = vsel %vm713, %v703, 0
      %v718 = vsel %vm713, %v704, 0
      %720 = vmatprep.subr.bf16.mxu0 %v700
      %721 = vmatpush1.bf16.msra.mxu0 %v699
      %722 = vmatprep.subr.bf16.mxu0 %v702
      %723 = vmatpush1.bf16.msra.mxu0 %v701
      %724 = vmatprep.subr.bf16.mxu0 %v718
      %725 = vmatpush1.bf16.msra.mxu0 %v715
      %726 = vmatprep.subr.bf16.mxu0 0
      %727 = vmatpush1.bf16.msra.mxu0 0
      %728 = vmatprep.subr.bf16.mxu0 0
      %729 = vmatpush1.bf16.msra.mxu0 0
      %730 = vmatprep.subr.bf16.mxu0 0
      %731 = vmatpush1.bf16.msra.mxu0 0
      %732 = vmatprep.subr.bf16.mxu0 0
      %733 = vmatpush1.bf16.msra.mxu0 0
      %734 = vmatprep.subr.bf16.mxu0 0
      %735 = vmatpush1.bf16.msra.mxu0 0
      %736 = vmatprep.subr.bf16.mxu0 0
      %737 = vmatpush1.bf16.msra.mxu0 0
      %738 = vmatprep.subr.bf16.mxu0 0
      %739 = vmatpush1.bf16.msra.mxu0 0
      %740 = vmatprep.subr.bf16.mxu0 0
      %741 = vmatpush1.bf16.msra.mxu0 0
      %742 = vmatprep.subr.bf16.mxu0 0
      %743 = vmatpush1.bf16.msra.mxu0 0
      %744 = vmatprep.subr.bf16.mxu0 0
      %745 = vmatpush1.bf16.msra.mxu0 0
      %746 = vmatprep.subr.bf16.mxu0 0
      %747 = vmatpush1.bf16.msra.mxu0 0
      %748 = vmatprep.subr.bf16.mxu0 0
      %749 = vmatpush1.bf16.msra.mxu0 0
      %750 = vmatprep.subr.bf16.mxu0 0
      %751 = vmatpush1.bf16.msra.mxu0 0
      %752 = vmatprep.mubr.bf16.mxu0 0
      %753 = vmatmul.mubr.bf16.gmra.mrb[0].mxu0 %v711
      %v754 = vpop.f32.mrb[0].mxu0
      %v755 = vadd.f32 %v682, %v754
      %v756 = vpop.f32.mrb[0].mxu0
      %v757 = vadd.f32 %v682, %v756
      %v758 = vpop.f32.mrb[0].mxu0
      %v759 = vpop.f32.mrb[0].mxu0
      %760 = vdwg.mxu0
      %v761 = vmax.f32 %v755, 0.0
      %v762 = vmax.f32 %v757, 0.0
      %v765 = vcombine.low %v761, %v762
      %766 = vrot.lane.b32.xlu0 %v765, 17
      %v767 = vpop.permute.xlu0 %766
      %v768 = vrot.slane %v767, 4
      %v769 = vsel %vm280, %v768, %v767
      %772 = vst.msk [vmem:[#allocation2] sm:$0xff] %vm286, %v769
      %773 = vst.msk [vmem:[#allocation2 + $0x8] sm:$0xf] %vm256, %v768
      %v774 = vld [vmem:[#allocation2] sm:$0xff]
      %v775 = vmul.f32 %v774, %v299
      %v777 = vcombine.high %v775, %v775
      %v779 = vpack.c.bf16 %v775, %v775
      %v780 = vpack.c.bf16 %v777, %v777
      %v783 = vunpack.c.l.b16 %v779
      %v784 = vunpack.c.l.b16 %v780
      %v785 = vpack.c.b16 %v784, %v783
      %787 = vst [vmem:[#allocation3] sm:$0x33] %v785
      %v788 = vld [vmem:[#allocation2] sm:$0xff]
      %v789 = vld [vmem:[#allocation2 + $0x8] sm:$0xf]
      %v790 = vmul.f32 %v788, %v330
      %v791 = vmul.f32 %v789, %v328
      %v793 = vcombine.high %v790, %v790
      %v795 = vpack.c.bf16 %v790, %v790
      %v796 = vpack.c.bf16 %v793, %v793
      %v797 = vpack.c.bf16 %v791, %v791
      %v801 = vunpack.c.l.b16 %v795
      %v802 = vunpack.c.l.b16 %v796
      %v803 = vunpack.c.l.b16 %v797
      %v804 = vpack.c.b16 %v802, %v801
      %v805 = vpack.c.b16 %v803, %v803
      %v806 = vrot.slane %v804, 6
      %v807 = vrot.slane %v805, 6
      %808 = vrot.lane.b32.xlu0 %v806, 127
      %v809 = vpop.permute.xlu0 %808
      %810 = vrot.lane.b32.xlu0 %v807, 127
      %v811 = vpop.permute.xlu0 %810
      %v812 = vrot.slane %v809, 4
      %v813 = vrot.slane %v811, 4
      %v814 = vsel %vm357, %v812, %v813
      %v815 = vsel %vm359, %v809, %v814
      %817 = vst [vmem:[#allocation3] sm:$0xcc] %v815
      %v818 = vld [vmem:[#allocation2] sm:$0xff]
      %v819 = vld [vmem:[#allocation2 + $0x8] sm:$0xf]
      %v820 = vmul.f32 %v818, %v379
      %v821 = vmul.f32 %v819, %v377
      %v823 = vcombine.high %v820, %v820
      %v825 = vpack.c.bf16 %v820, %v820
      %v826 = vpack.c.bf16 %v823, %v823
      %v827 = vpack.c.bf16 %v821, %v821
      %v831 = vunpack.c.l.b16 %v825
      %v832 = vunpack.c.l.b16 %v826
      %v833 = vunpack.c.l.b16 %v827
      %v834 = vpack.c.b16 %v832, %v831
      %v835 = vpack.c.b16 %v833, %v833
      %836 = vrot.lane.b32.xlu0 %v834, 126
      %v837 = vpop.permute.xlu0 %836
      %838 = vrot.lane.b32.xlu0 %v835, 126
      %v839 = vpop.permute.xlu0 %838
      %v840 = vrot.slane %v837, 4
      %v841 = vrot.slane %v839, 4
      %v842 = vsel %vm357, %v840, %v841
      %v843 = vsel %vm405, %v837, %v842
      %845 = vst [vmem:[#allocation3 + $0x8] sm:$0x33] %v843
      %v846 = vld [vmem:[#allocation2] sm:$0xff]
      %v847 = vld [vmem:[#allocation2 + $0x8] sm:$0xf]
      %v848 = vmul.f32 %v846, %v425
      %v849 = vmul.f32 %v847, %v423
      %v851 = vcombine.high %v848, %v848
      %v853 = vpack.c.bf16 %v848, %v848
      %v854 = vpack.c.bf16 %v851, %v851
      %v855 = vpack.c.bf16 %v849, %v849
      %v859 = vunpack.c.l.b16 %v853
      %v860 = vunpack.c.l.b16 %v854
      %v861 = vunpack.c.l.b16 %v855
      %v862 = vpack.c.b16 %v860, %v859
      %v863 = vpack.c.b16 %v861, %v861
      %v864 = vrot.slane %v862, 6
      %v865 = vrot.slane %v863, 6
      %866 = vrot.lane.b32.xlu0 %v864, 112
      %v867 = vpop.permute.xlu0 %866
      %868 = vrot.lane.b32.xlu0 %v865, 112
      %v869 = vpop.permute.xlu0 %868
      %v870 = vrot.slane %v867, 4
      %v871 = vrot.slane %v869, 4
      %v872 = vsel %vm357, %v870, %v871
      %v873 = vsel %vm453, %v867, %v872
      %875 = vst [vmem:[#allocation3 + $0x8] sm:$0xcc] %v873
      %v876 = vld [vmem:[#allocation2] sm:$0xff]
      %v877 = vld [vmem:[#allocation2 + $0x8] sm:$0xf]
      %v879 = vcombine.high %v876, %v876
      %v881 = vpack.c.bf16 %v876, %v876
      %v882 = vpack.c.bf16 %v879, %v879
      %v883 = vpack.c.bf16 %v877, %v877
      %v887 = vunpack.c.l.b16 %v881
      %v888 = vunpack.c.l.b16 %v882
      %v889 = vunpack.c.l.b16 %v883
      %v890 = vpack.c.b16 %v888, %v887
      %v891 = vpack.c.b16 %v889, %v889
      %892 = vrot.lane.b32.xlu0 %v890, 111
      %v893 = vpop.permute.xlu0 %892
      %894 = vrot.lane.b32.xlu0 %v891, 111
      %v895 = vpop.permute.xlu0 %894
      %v896 = vrot.slane %v893, 4
      %v897 = vrot.slane %v895, 4
      %v898 = vsel %vm357, %v896, %v897
      %v899 = vsel %vm480, %v893, %v898
      %901 = vst [vmem:[#allocation3 + $0x10] sm:$0x33] %v899
      %v902 = vld [vmem:[#allocation2] sm:$0xff]
      %v903 = vld [vmem:[#allocation2 + $0x8] sm:$0xf]
      %v904 = vmul.f32 %v902, %v500
      %v905 = vmul.f32 %v903, %v498
      %v907 = vcombine.high %v904, %v904
      %v909 = vpack.c.bf16 %v904, %v904
      %v910 = vpack.c.bf16 %v907, %v907
      %v911 = vpack.c.bf16 %v905, %v905
      %v915 = vunpack.c.l.b16 %v909
      %v916 = vunpack.c.l.b16 %v910
      %v917 = vunpack.c.l.b16 %v911
      %v918 = vpack.c.b16 %v916, %v915
      %v919 = vpack.c.b16 %v917, %v917
      %v920 = vrot.slane %v918, 6
      %v921 = vrot.slane %v919, 6
      %922 = vrot.lane.b32.xlu0 %v920, 110
      %v923 = vpop.permute.xlu0 %922
      %924 = vrot.lane.b32.xlu0 %v921, 110
      %v925 = vpop.permute.xlu0 %924
      %v926 = vrot.slane %v923, 4
      %v927 = vrot.slane %v925, 4
      %v928 = vsel %vm357, %v926, %v927
      %v929 = vsel %vm528, %v923, %v928
      %931 = vst [vmem:[#allocation3 + $0x10] sm:$0xcc] %v929
      %v932 = vld [vmem:[#allocation2] sm:$0xff]
      %v933 = vld [vmem:[#allocation2 + $0x8] sm:$0xf]
      %v934 = vmul.f32 %v932, %v548
      %v935 = vmul.f32 %v933, %v546
      %v937 = vcombine.high %v934, %v934
      %v939 = vpack.c.bf16 %v934, %v934
      %v940 = vpack.c.bf16 %v937, %v937
      %v941 = vpack.c.bf16 %v935, %v935
      %v945 = vunpack.c.l.b16 %v939
      %v946 = vunpack.c.l.b16 %v940
      %v947 = vunpack.c.l.b16 %v941
      %v948 = vpack.c.b16 %v946, %v945
      %v949 = vpack.c.b16 %v947, %v947
      %950 = vrot.lane.b32.xlu0 %v948, 96
      %v951 = vpop.permute.xlu0 %950
      %952 = vrot.lane.b32.xlu0 %v949, 96
      %v953 = vpop.permute.xlu0 %952
      %v954 = vrot.slane %v951, 4
      %v955 = vrot.slane %v953, 4
      %v956 = vsel %vm357, %v954, %v955
      %v957 = vsel %vm574, %v951, %v956
      %959 = vst [vmem:[#allocation3 + $0x18] sm:$0x33] %v957
      %v960 = vld [vmem:[#allocation2] sm:$0xff]
      %v961 = vld [vmem:[#allocation2 + $0x8] sm:$0xf]
      %v962 = vmul.f32 %v960, %v594
      %v963 = vmul.f32 %v961, %v592
      %v965 = vcombine.high %v962, %v962
      %v967 = vpack.c.bf16 %v962, %v962
      %v968 = vpack.c.bf16 %v965, %v965
      %v969 = vpack.c.bf16 %v963, %v963
      %v973 = vunpack.c.l.b16 %v967
      %v974 = vunpack.c.l.b16 %v968
      %v975 = vunpack.c.l.b16 %v969
      %v976 = vpack.c.b16 %v974, %v973
      %v977 = vpack.c.b16 %v975, %v975
      %v978 = vrot.slane %v976, 6
      %v979 = vrot.slane %v977, 6
      %980 = vrot.lane.b32.xlu0 %v978, 95
      %v981 = vpop.permute.xlu0 %980
      %982 = vrot.lane.b32.xlu0 %v979, 95
      %v983 = vpop.permute.xlu0 %982
      %v984 = vrot.slane %v981, 4
      %v985 = vrot.slane %v983, 4
      %v986 = vsel %vm357, %v984, %v985
      %v987 = vsel %vm622, %v981, %v986
      %989 = vst [vmem:[#allocation3 + $0x18] sm:$0xcc] %v987
      %v990 = vld [vmem:[#allocation2] sm:$0xff]
      %v991 = vld [vmem:[#allocation2 + $0x8] sm:$0xf]
      %v992 = vmul.f32 %v990, %v642
      %v993 = vmul.f32 %v991, %v640
      %v995 = vcombine.high %v992, %v992
      %v997 = vpack.c.bf16 %v992, %v992
      %v998 = vpack.c.bf16 %v995, %v995
      %v999 = vpack.c.bf16 %v993, %v993
      %v1003 = vunpack.c.l.b16 %v997
      %v1004 = vunpack.c.l.b16 %v998
      %v1005 = vunpack.c.l.b16 %v999
      %v1006 = vpack.c.b16 %v1004, %v1003
      %v1007 = vpack.c.b16 %v1005, %v1005
      %1008 = vrot.lane.b32.xlu0 %v1006, 94
      %v1009 = vpop.permute.xlu0 %1008
      %1010 = vrot.lane.b32.xlu0 %v1007, 94
      %v1011 = vpop.permute.xlu0 %1010
      %v1012 = vrot.slane %v1009, 4
      %v1013 = vrot.slane %v1011, 4
      %v1014 = vsel %vm357, %v1012, %v1013
      %v1015 = vsel %vm668, %v1009, %v1014
      %1017 = vst [vmem:[#allocation3 + $0x20] sm:$0x33] %v1015
      %v1018 = vld [vmem:[%s3] sm:$0x3]
      %v1019 = vld [vmem:[#allocation3] sm:$0xff]
      %v1020 = vld [vmem:[#allocation3 + $0x8] sm:$0xff]
      %v1021 = vld [vmem:[#allocation3 + $0x10] sm:$0xff]
      %v1022 = vld [vmem:[#allocation3 + $0x18] sm:$0xff]
      %v1023 = vld [vmem:[#allocation3 + $0x20] sm:$0x33]
      %v1024 = vld [vmem:[%s4] sm:$0xf]
      %1026 = vset.pattern.permute.xlu0 0
      %1027 = vperm.xlu0 %1026, %v1024
      %v1028 = vpop.permute.xlu0 %1027
      %v1035 = vunpack.c.l.b16 %v1019
      %v1036 = vunpack.c.h.b16 %v1019
      %v1037 = vunpack.c.l.b16 %v1020
      %v1038 = vunpack.c.h.b16 %v1020
      %v1039 = vunpack.c.l.b16 %v1021
      %v1040 = vunpack.c.h.b16 %v1021
      %v1041 = vunpack.c.l.b16 %v1022
      %v1042 = vunpack.c.h.b16 %v1022
      %v1043 = vunpack.c.l.b16 %v1023
      %v1044 = vunpack.c.h.b16 %v1023
      %v1045 = vpack.c.b16 %v1037, %v1035
      %v1046 = vpack.c.b16 %v1038, %v1036
      %v1047 = vpack.c.b16 %v1041, %v1039
      %v1048 = vpack.c.b16 %v1042, %v1040
      %v1049 = vpack.c.b16 %v1043, %v1043
      %v1050 = vpack.c.b16 %v1044, %v1044
      %v1056 = vsel %vm709, %v1018, 0
      %v1059 = vsel %vm713, %v1049, 0
      %v1062 = vsel %vm713, %v1050, 0
      %1064 = vmatprep.subr.bf16.mxu0 %v1046
      %1065 = vmatpush1.bf16.msra.mxu0 %v1045
      %1066 = vmatprep.subr.bf16.mxu0 %v1048
      %1067 = vmatpush1.bf16.msra.mxu0 %v1047
      %1068 = vmatprep.subr.bf16.mxu0 %v1062
      %1069 = vmatpush1.bf16.msra.mxu0 %v1059
      %1070 = vmatprep.subr.bf16.mxu0 0
      %1071 = vmatpush1.bf16.msra.mxu0 0
      %1072 = vmatprep.subr.bf16.mxu0 0
      %1073 = vmatpush1.bf16.msra.mxu0 0
      %1074 = vmatprep.subr.bf16.mxu0 0
      %1075 = vmatpush1.bf16.msra.mxu0 0
      %1076 = vmatprep.subr.bf16.mxu0 0
      %1077 = vmatpush1.bf16.msra.mxu0 0
      %1078 = vmatprep.subr.bf16.mxu0 0
      %1079 = vmatpush1.bf16.msra.mxu0 0
      %1080 = vmatprep.subr.bf16.mxu0 0
      %1081 = vmatpush1.bf16.msra.mxu0 0
      %1082 = vmatprep.subr.bf16.mxu0 0
      %1083 = vmatpush1.bf16.msra.mxu0 0
      %1084 = vmatprep.subr.bf16.mxu0 0
      %1085 = vmatpush1.bf16.msra.mxu0 0
      %1086 = vmatprep.subr.bf16.mxu0 0
      %1087 = vmatpush1.bf16.msra.mxu0 0
      %1088 = vmatprep.subr.bf16.mxu0 0
      %1089 = vmatpush1.bf16.msra.mxu0 0
      %1090 = vmatprep.subr.bf16.mxu0 0
      %1091 = vmatpush1.bf16.msra.mxu0 0
      %1092 = vmatprep.subr.bf16.mxu0 0
      %1093 = vmatpush1.bf16.msra.mxu0 0
      %1094 = vmatprep.subr.bf16.mxu0 0
      %1095 = vmatpush1.bf16.msra.mxu0 0
      %1096 = vmatprep.mubr.bf16.mxu0 0
      %1097 = vmatmul.mubr.bf16.gmra.mrb[0].mxu0 %v1056
      %v1098 = vpop.f32.mrb[0].mxu0
      %v1099 = vadd.f32 %v1028, %v1098
      %v1100 = vpop.f32.mrb[0].mxu0
      %v1101 = vadd.f32 %v1028, %v1100
      %v1102 = vpop.f32.mrb[0].mxu0
      %v1103 = vpop.f32.mrb[0].mxu0
      %1104 = vdwg.mxu0
      %v1105 = vcombine.high %v275, %v275
      %v1107 = vadd.f32 %v1099, %v275
      %v1108 = vadd.f32 %v1101, %v1105
      %v1109 = vmax.f32 %v1107, 0.0
      %v1110 = vmax.f32 %v1108, 0.0
      %v1113 = vcombine.low %v1109, %v1110
      %1115 = vst [vmem:[%s253] sm:$0xff] %v1113
      %s1116 = smul.u32 2, %s17
      %p1117 = scmp.lt.s32.totalorder %s1116, 3
      %s1118 = scalar_select %p1117, %s1116, 3
      %s1119 = smul.addr %s1118, 4
      %s1120 = scalar_lea.vmem %s6, %s1119
      // Predicated region
      $region45: #{resblock_pallas.1} parent=43 // pred_check
        %p1121 = pneg %p166
      $region46: #{resblock_pallas.1} parent=43 // pred_check_branch
        %1123 = sbr.rel (%p1121) target = $region48
      $region47: #{resblock_pallas.1} parent=43 // pred_region
        %s1124 = smul.u32 2, %s17
      $region48: #{resblock_pallas.1} parent=43 // pred_fallthru
        _
    $region44: #{resblock_pallas.1} parent=5 // pred_fallthru
      _
    %p1125 = scmp.le.s32.totalorder 2, %s12
    // Predicated region
    $region49: #{resblock_pallas.1} parent=5 // pred_check
      %p1126 = pneg %p1125
    $region50: #{resblock_pallas.1} parent=5 // pred_check_branch
      %1128 = sbr.rel (%p1126) target = $region52
    $region51: #{resblock_pallas.1} parent=5 // pred_region
      %s1129 = ssub.s32 %s12, 2
      // Predicated region
      $region53: #{resblock_pallas.1} parent=51 // pred_check
        %p1130 = pneg %p172
      $region54: #{resblock_pallas.1} parent=51 // pred_check_branch
        %1132 = sbr.rel (%p1130) target = $region56
      $region55: #{resblock_pallas.1} parent=51 // pred_region
        %s1133 = smul.u32 2, %s18
        %p1134 = scmp.lt.s32.totalorder %s1133, 3
        %s1135 = scalar_select %p1134, %s1133, 3
        %s1136 = smul.addr %s1135, 4
        %s1137 = scalar_lea.vmem %s6, %s1136
      $region56: #{resblock_pallas.1} parent=51 // pred_fallthru
        _
    $region52: #{resblock_pallas.1} parent=5 // pred_fallthru
      _
  $region6: #{resblock_pallas.1} parent=0 // loop_footer
    %s16 = sadd.s32 1, %s12
  $region7: #{resblock_pallas.1} parent=0 // loop_footer_branch
    %11 = sbr.rel target = $region3
  $region8: #{resblock_pallas.1} parent=0 // loop_exit
    _

</llo_original>
